<compile_context>
chip_gen: v5e
topology: v5e:2x2
jax: 0.10.0
libtpu: 0.0.40
codegen_flags: <defaults>
</compile_context>

<pallas_src>
import jax
import jax.numpy as jnp
from jax import lax
from jax.experimental import pallas as pl
from jax.experimental.pallas import tpu as pltpu


def _downsample_conv_kernel(x_ref, w_ref, b_ref, o_ref, xpad_ref):
    # x_ref   : (1, Ho, Wo, C4)        bf16 unshuffled input tile (one batch elem)
    # w_ref   : (9*C4, COUT_PAD)       bf16 flattened HWIO weight, N padded to 128
    # b_ref   : (1, COUT_PAD)          f32 bias (padded)
    # o_ref   : (1, Ho, Wo, COUT_PAD)  f32 output tile (lane-dense, 128 lanes)
    # xpad_ref: VMEM (Ho+2, Wo+2, C4)  f32 scratch holding the zero-padded tile
    Ho, Wo, C4 = x_ref.shape[1], x_ref.shape[2], x_ref.shape[3]

    # In-kernel zero halo: replaces the wrapper jnp.pad (saves one full HBM
    # read+write of the input). Scratch kept in f32 so the sub-window store
    # and the tap slices below use plain (unpacked) layouts.
    xpad_ref[...] = jnp.zeros_like(xpad_ref)
    xpad_ref[1:Ho + 1, 1:Wo + 1, :] = x_ref[0].astype(jnp.float32)

    # im2col: build the (Ho*Wo, 9*C4) patch matrix. K index = dy*3*C4 + dx*C4 + c,
    # matching the wrapper's HWIO -> (9*C4, Cout) weight flattening.
    cols = []
    for dy in range(3):
        for dx in range(3):
            cols.append(xpad_ref[dy:dy + Ho, dx:dx + Wo, :])
    patches = jnp.concatenate(cols, axis=-1).reshape(Ho * Wo, 9 * C4)

    # Single fused MXU matmul: bf16 operands, f32 accumulation.
    acc = jnp.dot(patches.astype(jnp.bfloat16), w_ref[...],
                  preferred_element_type=jnp.float32)
    acc = acc + b_ref[...]
    o_ref[0] = acc.reshape(Ho, Wo, o_ref.shape[3]).astype(o_ref.dtype)


def downsample_pallas(x_nchw, weight_oihw, bias):
    """x_nchw: (B, Cin, H, W); weight_oihw: (Cout, Cin*4, 3, 3); bias: (Cout,)."""
    B, C, H, W = x_nchw.shape
    Ho, Wo = H // 2, W // 2
    C4 = C * 4
    K = 9 * C4
    Cout = weight_oihw.shape[0]
    cout_pad = max(128, pl.cdiv(Cout, 128) * 128)   # lane-dense output / MXU N

    # Fused PixelUnshuffle(2) + NCHW->NHWC: a single transpose, cast to bf16.
    # Resulting channel index c*4 + i*2 + j matches torch.nn.PixelUnshuffle(2).
    xu = x_nchw.reshape(B, C, Ho, 2, Wo, 2)
    xu = jnp.transpose(xu, (0, 2, 4, 1, 3, 5))            # (B, Ho, Wo, C, 2, 2)
    x_nhwc = xu.reshape(B, Ho, Wo, C4).astype(jnp.bfloat16)

    # Weight prep (once): OIHW -> HWIO -> (9*C4, Cout), pad N to 128, cast bf16.
    w = jnp.transpose(weight_oihw, (2, 3, 1, 0)).reshape(K, Cout)
    w = jnp.pad(w, ((0, 0), (0, cout_pad - Cout))).astype(jnp.bfloat16)
    b2 = jnp.pad(bias.astype(jnp.float32), (0, cout_pad - Cout)).reshape(1, cout_pad)

    out_padded = pl.pallas_call(
        _downsample_conv_kernel,
        out_shape=jax.ShapeDtypeStruct((B, Ho, Wo, cout_pad), jnp.float32),
        grid_spec=pltpu.PrefetchScalarGridSpec(
            num_scalar_prefetch=0,
            grid=(B,),
            in_specs=[
                pl.BlockSpec((1, Ho, Wo, C4), lambda i: (i, 0, 0, 0)),
                pl.BlockSpec((K, cout_pad), lambda i: (0, 0)),
                pl.BlockSpec((1, cout_pad), lambda i: (0, 0)),
            ],
            out_specs=pl.BlockSpec((1, Ho, Wo, cout_pad), lambda i: (i, 0, 0, 0)),
            scratch_shapes=[pltpu.VMEM((Ho + 2, Wo + 2, C4), jnp.float32)],
        ),
        compiler_params=pltpu.CompilerParams(
            dimension_semantics=("parallel",)),
    )(x_nhwc, w, b2)

    # Strip the lane padding and emit the module's NCHW convention.
    out = jnp.transpose(out_padded[..., :Cout], (0, 3, 1, 2))
    return out.astype(x_nchw.dtype)


def pixel_unshuffle_nchw(x, r=2):
    # PyTorch PixelUnshuffle semantics.
    B, C, H, W = x.shape
    Ho, Wo = H // r, W // r
    x = x.reshape(B, C, Ho, r, Wo, r)
    x = jnp.transpose(x, (0, 1, 3, 5, 2, 4))
    return x.reshape(B, C * r * r, Ho, Wo)


def downsample_reference(x_nchw, weight_oihw, bias, compute_dtype=jnp.float32):
    """Pure-JAX reference; compute_dtype controls operand quantization."""
    xu = pixel_unshuffle_nchw(x_nchw, 2).astype(compute_dtype)
    out = lax.conv_general_dilated(
        xu, weight_oihw.astype(compute_dtype),
        window_strides=(1, 1), padding=((1, 1), (1, 1)),
        dimension_numbers=("NCHW", "OIHW", "NCHW"),
        preferred_element_type=jnp.float32)
    return out + bias.astype(jnp.float32).reshape(1, -1, 1, 1)


if __name__ == "__main__":
    key = jax.random.PRNGKey(0)
    k_x, k_w, k_b = jax.random.split(key, 3)

    # DownSample(in_channels=4, out_channels=8); input (B=2, C=4, H=16, W=16)
    in_channels, out_channels = 4, 8
    B, H, W = 2, 16, 16

    x = jax.random.normal(k_x, (B, in_channels, H, W), dtype=jnp.float32)
    weight = 0.1 * jax.random.normal(
        k_w, (out_channels, in_channels * 4, 3, 3), dtype=jnp.float32)
    bias = 0.1 * jax.random.normal(k_b, (out_channels,), dtype=jnp.float32)

    fn = jax.jit(downsample_pallas)
    out = jax.block_until_ready(fn(x, weight, bias))

    assert out.shape == (B, out_channels, H // 2, W // 2), out.shape

    # Tight check against a bf16-quantized reference (same operand precision,
    # f32 accumulation), then a loose sanity check vs the full-f32 module.
    ref_bf16 = downsample_reference(x, weight, bias, compute_dtype=jnp.bfloat16)
    assert jnp.allclose(out, ref_bf16, atol=2e-2, rtol=2e-2), \
        float(jnp.max(jnp.abs(out - ref_bf16)))

    ref_f32 = downsample_reference(x, weight, bias, compute_dtype=jnp.float32)
    assert jnp.allclose(out, ref_f32, atol=1e-1, rtol=1e-1), \
        float(jnp.max(jnp.abs(out - ref_f32)))

    print("KERNEL_OK")
</pallas_src>

<mosaic_0001>
module attributes {stable_mosaic.version = 11 : i64} {
  func.func @_downsample_conv_kernel(%arg0: i32, %arg1: memref<1x8x8x16xbf16, #tpu.memory_space<vmem>>, %arg2: memref<144x128xbf16, #tpu.memory_space<vmem>>, %arg3: memref<1x128xf32, #tpu.memory_space<vmem>>, %arg4: memref<1x8x8x128xf32, #tpu.memory_space<vmem>>, %arg5: memref<10x10x16xf32, #tpu.memory_space<vmem>>) attributes {dimension_semantics = [#tpu.dimension_semantics<parallel>], iteration_bounds = array<i64: 2>, scalar_prefetch = 0 : i64, scratch_operands = 1 : i64, tpu.core_type = #tpu.core_type<tc>, window_params = [{transform_indices = @transform_0, window_bounds = array<i64: 1, 8, 8, 16>}, {pipeline_mode = #tpu.pipeline_mode<synchronous>, transform_indices = @transform_1, window_bounds = array<i64: 144, 128>}, {pipeline_mode = #tpu.pipeline_mode<synchronous>, transform_indices = @transform_2, window_bounds = array<i64: 1, 128>}, {transform_indices = @transform_3, window_bounds = array<i64: 1, 8, 8, 128>}]} {
    %cst = arith.constant 0.000000e+00 : f32
    %0 = vector.broadcast %cst : f32 to vector<10x10x16xf32>
    %c0 = arith.constant 0 : index
    %c0_0 = arith.constant 0 : index
    %c0_1 = arith.constant 0 : index
    %1 = vector.load %arg5[%c0, %c0_0, %c0_1] : memref<10x10x16xf32, #tpu.memory_space<vmem>>, vector<10x10x16xf32>
    tpu.vector_store %arg5[%c0, %c0_0, %c0_1], %0 {strides = array<i32>} : memref<10x10x16xf32, #tpu.memory_space<vmem>>, vector<10x10x16xf32>,
    %c0_2 = arith.constant 0 : index
    %c0_3 = arith.constant 0 : index
    %c0_4 = arith.constant 0 : index
    %c0_5 = arith.constant 0 : index
    %2 = vector.load %arg1[%c0_2, %c0_3, %c0_4, %c0_5] : memref<1x8x8x16xbf16, #tpu.memory_space<vmem>>, vector<1x8x8x16xbf16>
    %3 = vector.shape_cast %2 : vector<1x8x8x16xbf16> to vector<8x8x16xbf16>
    %4 = arith.extf %3 : vector<8x8x16xbf16> to vector<8x8x16xf32>
    %c1 = arith.constant 1 : index
    %c1_6 = arith.constant 1 : index
    %c0_7 = arith.constant 0 : index
    %5 = vector.load %arg5[%c1, %c1_6, %c0_7] : memref<10x10x16xf32, #tpu.memory_space<vmem>>, vector<8x8x16xf32>
    tpu.vector_store %arg5[%c1, %c1_6, %c0_7], %4 {strides = array<i32>} : memref<10x10x16xf32, #tpu.memory_space<vmem>>, vector<8x8x16xf32>,
    %c0_8 = arith.constant 0 : index
    %c0_9 = arith.constant 0 : index
    %c0_10 = arith.constant 0 : index
    %6 = vector.load %arg5[%c0_8, %c0_9, %c0_10] : memref<10x10x16xf32, #tpu.memory_space<vmem>>, vector<8x8x16xf32>
    %c0_11 = arith.constant 0 : index
    %c1_12 = arith.constant 1 : index
    %c0_13 = arith.constant 0 : index
    %7 = vector.load %arg5[%c0_11, %c1_12, %c0_13] : memref<10x10x16xf32, #tpu.memory_space<vmem>>, vector<8x8x16xf32>
    %c0_14 = arith.constant 0 : index
    %c2 = arith.constant 2 : index
    %c0_15 = arith.constant 0 : index
    %8 = vector.load %arg5[%c0_14, %c2, %c0_15] : memref<10x10x16xf32, #tpu.memory_space<vmem>>, vector<8x8x16xf32>
    %c1_16 = arith.constant 1 : index
    %c0_17 = arith.constant 0 : index
    %c0_18 = arith.constant 0 : index
    %9 = vector.load %arg5[%c1_16, %c0_17, %c0_18] : memref<10x10x16xf32, #tpu.memory_space<vmem>>, vector<8x8x16xf32>
    %c1_19 = arith.constant 1 : index
    %c1_20 = arith.constant 1 : index
    %c0_21 = arith.constant 0 : index
    %10 = vector.load %arg5[%c1_19, %c1_20, %c0_21] : memref<10x10x16xf32, #tpu.memory_space<vmem>>, vector<8x8x16xf32>
    %c1_22 = arith.constant 1 : index
    %c2_23 = arith.constant 2 : index
    %c0_24 = arith.constant 0 : index
    %11 = vector.load %arg5[%c1_22, %c2_23, %c0_24] : memref<10x10x16xf32, #tpu.memory_space<vmem>>, vector<8x8x16xf32>
    %c2_25 = arith.constant 2 : index
    %c0_26 = arith.constant 0 : index
    %c0_27 = arith.constant 0 : index
    %12 = vector.load %arg5[%c2_25, %c0_26, %c0_27] : memref<10x10x16xf32, #tpu.memory_space<vmem>>, vector<8x8x16xf32>
    %c2_28 = arith.constant 2 : index
    %c1_29 = arith.constant 1 : index
    %c0_30 = arith.constant 0 : index
    %13 = vector.load %arg5[%c2_28, %c1_29, %c0_30] : memref<10x10x16xf32, #tpu.memory_space<vmem>>, vector<8x8x16xf32>
    %c2_31 = arith.constant 2 : index
    %c2_32 = arith.constant 2 : index
    %c0_33 = arith.constant 0 : index
    %14 = vector.load %arg5[%c2_31, %c2_32, %c0_33] : memref<10x10x16xf32, #tpu.memory_space<vmem>>, vector<8x8x16xf32>
    %15 = tpu.concatenate %6, %7, %8, %9, %10, %11, %12, %13, %14 in 2 : vector<8x8x16xf32>, vector<8x8x16xf32>, vector<8x8x16xf32>, vector<8x8x16xf32>, vector<8x8x16xf32>, vector<8x8x16xf32>, vector<8x8x16xf32>, vector<8x8x16xf32>, vector<8x8x16xf32> -> vector<8x8x144xf32>
    %16 = vector.shape_cast %15 : vector<8x8x144xf32> to vector<64x144xf32>
    %17 = arith.truncf %16 : vector<64x144xf32> to vector<64x144xbf16>
    %c0_34 = arith.constant 0 : index
    %c0_35 = arith.constant 0 : index
    %18 = vector.load %arg2[%c0_34, %c0_35] : memref<144x128xbf16, #tpu.memory_space<vmem>>, vector<144x128xbf16>
    %cst_36 = arith.constant dense<0.000000e+00> : vector<64x128xf32>
    %19 = tpu.matmul %17, %18, %cst_36 {dimension_numbers = #tpu.dot_dimension_numbers<[1], [0], [0], [1], [0, 0, 1, 1], [], []>} : vector<64x144xbf16>, vector<144x128xbf16>, vector<64x128xf32> -> vector<64x128xf32>
    %c0_37 = arith.constant 0 : index
    %c0_38 = arith.constant 0 : index
    %20 = vector.load %arg3[%c0_37, %c0_38] : memref<1x128xf32, #tpu.memory_space<vmem>>, vector<1x128xf32>
    %21 = vector.broadcast %20 : vector<1x128xf32> to vector<64x128xf32>
    %22 = arith.addf %19, %21 : vector<64x128xf32>
    %23 = vector.shape_cast %22 : vector<64x128xf32> to vector<8x8x128xf32>
    %c0_39 = arith.constant 0 : index
    %c0_40 = arith.constant 0 : index
    %c0_41 = arith.constant 0 : index
    %c0_42 = arith.constant 0 : index
    %24 = vector.load %arg4[%c0_39, %c0_40, %c0_41, %c0_42] : memref<1x8x8x128xf32, #tpu.memory_space<vmem>>, vector<1x8x8x128xf32>
    %25 = vector.shape_cast %24 : vector<1x8x8x128xf32> to vector<8x8x128xf32>
    %26 = vector.shape_cast %23 : vector<8x8x128xf32> to vector<1x8x8x128xf32>
    tpu.vector_store %arg4[%c0_39, %c0_40, %c0_41, %c0_42], %26 {strides = array<i32>} : memref<1x8x8x128xf32, #tpu.memory_space<vmem>>, vector<1x8x8x128xf32>,
    return
  }
  func.func @transform_0(%arg0: i32) -> (i32, i32, i32, i32) {
    %c0_i32 = arith.constant 0 : i32
    %c0_i32_0 = arith.constant 0 : i32
    %c0_i32_1 = arith.constant 0 : i32
    %c0_i32_2 = arith.constant 0 : i32
    return %arg0, %c0_i32, %c0_i32_0, %c0_i32_1 : i32, i32, i32, i32
  }
  func.func @transform_1(%arg0: i32) -> (i32, i32) {
    %c0_i32 = arith.constant 0 : i32
    %c0_i32_0 = arith.constant 0 : i32
    %c0_i32_1 = arith.constant 0 : i32
    return %c0_i32, %c0_i32_0 : i32, i32
  }
  func.func @transform_2(%arg0: i32) -> (i32, i32) {
    %c0_i32 = arith.constant 0 : i32
    %c0_i32_0 = arith.constant 0 : i32
    %c0_i32_1 = arith.constant 0 : i32
    return %c0_i32, %c0_i32_0 : i32, i32
  }
  func.func @transform_3(%arg0: i32) -> (i32, i32, i32, i32) {
    %c0_i32 = arith.constant 0 : i32
    %c0_i32_0 = arith.constant 0 : i32
    %c0_i32_1 = arith.constant 0 : i32
    %c0_i32_2 = arith.constant 0 : i32
    return %arg0, %c0_i32, %c0_i32_0, %c0_i32_1 : i32, i32, i32, i32
  }
}

</mosaic_0001>

<llo_original>
// kernel: downsample_pallas.1
$region0: #{downsample_pallas.1}
  #allocation0 [shape = 'u32[]', space=smem, size = 0x4, offset = 0x4, fixed_abs, tag = 'smem constant byte address 0x4 - core index']
  #allocation1 [shape = 'u32[72,128]{1,0:T(1,128)}', space=vmem, size = 0x9000, scoped, tag = 'internal scratch']
  #allocation2 [shape = 'f32[10,10,16]{2,1,0:T(8,128)}', space=vmem, size = 0x14000, scoped, tag = 'scratch operand']
  %s0 = inlined_call_operand.vmem [shape: bf16[2,8,8,16], index: 0, kind: input, shape index: {}]
  %s1 = inlined_call_operand.vmem [shape: bf16[144,128], index: 1, kind: input, shape index: {}]
  %s2 = inlined_call_operand.vmem [shape: f32[1,128], index: 2, kind: input, shape index: {}]
  %s3 = inlined_call_operand.vmem [shape: f32[2,8,8,128], index: 3, kind: output, shape index: {}]
  %s4 = sld [smem:[#allocation0]]
  $region45: #{downsample_pallas.1} parent=0
    _
  %s6 = ssub.s32 1, %s4
  %s7 = scalar_select 0, %s6, %s4
  loop: start=0, step=1, limit=4
  $region2: #{downsample_pallas.1} parent=0 // loop_pre_header
    _
  $region3: #{downsample_pallas.1} parent=0 // loop_header
    %s9 = sphi 0, %s13
    %p10 = scmp.ge.s32.totalorder %s9, 4
    %s19 = sphi 0, %s21
    %s22 = sphi 0, %s19
    %s23 = sphi 0, %s22
    %s39 = sphi 0, %s23
    %s43 = sphi 0, %s43
    %s45 = sphi 0, %s43
    %s46 = sphi 0, %s45
    %s60 = sphi 0, %s46
    %s64 = sphi 0, %s64
    %s66 = sphi 0, %s64
    %s67 = sphi 0, %s66
    %s81 = sphi 0, %s67
    %s87 = sphi 0, %s89
    %s90 = sphi 0, %s87
    %s91 = sphi 0, %s90
    %s107 = sphi 0, %s91
  $region4: #{downsample_pallas.1} parent=0 // loop_header_branch
    %12 = sbr.rel (%p10) target = $region8
  $region5: #{downsample_pallas.1} parent=0 // loop_body
    %s14 = ssub.s32 %s9, 1
    %s15 = ssub.s32 %s9, 2
    %s16 = sadd.s32 %s9, 1
    %s17 = ssub.s32 %s9, %s16
    %p18 = scmp.eq.s32.totalorder %s17, 0
    %s20 = sadd.s32 %s19, 1
    %s21 = scalar_select %p18, %s19, %s20
    %p24 = pneg %p18
    %p25 = scmp.eq.s32.totalorder %s9, 1
    %p26 = por %p24, %p25
    %p27 = scmp.ne.s32.totalorder %s19, %s22
    %p28 = scmp.eq.s32.totalorder %s9, 0
    %p29 = por %p27, %p28
    %p30 = scmp.ne.s32.totalorder %s19, %s22
    %p31 = scmp.eq.s32.totalorder %s14, 1
    %p32 = por %p30, %p31
    %p33 = scmp.ne.s32.totalorder %s22, %s23
    %p34 = scmp.eq.s32.totalorder %s14, 0
    %p35 = por %p33, %p34
    %p36 = scmp.ne.s32.totalorder %s22, %s23
    %p37 = scmp.eq.s32.totalorder %s15, 1
    %p38 = por %p36, %p37
    %p40 = scmp.ne.s32.totalorder %s23, %s39
    %p41 = scmp.eq.s32.totalorder %s15, 0
    %p42 = por %p40, %p41
    %s44 = sadd.s32 %s43, 1
    %p47 = scmp.eq.s32.totalorder %s9, 1
    %p48 = scmp.ne.s32.totalorder %s43, %s45
    %p49 = scmp.eq.s32.totalorder %s9, 0
    %p50 = por %p48, %p49
    %p51 = scmp.ne.s32.totalorder %s43, %s45
    %p52 = scmp.eq.s32.totalorder %s14, 1
    %p53 = por %p51, %p52
    %p54 = scmp.ne.s32.totalorder %s45, %s46
    %p55 = scmp.eq.s32.totalorder %s14, 0
    %p56 = por %p54, %p55
    %p57 = scmp.ne.s32.totalorder %s45, %s46
    %p58 = scmp.eq.s32.totalorder %s15, 1
    %p59 = por %p57, %p58
    %p61 = scmp.ne.s32.totalorder %s46, %s60
    %p62 = scmp.eq.s32.totalorder %s15, 0
    %p63 = por %p61, %p62
    %s65 = sadd.s32 %s64, 1
    %p68 = scmp.eq.s32.totalorder %s9, 1
    %p69 = scmp.ne.s32.totalorder %s64, %s66
    %p70 = scmp.eq.s32.totalorder %s9, 0
    %p71 = por %p69, %p70
    %p72 = scmp.ne.s32.totalorder %s64, %s66
    %p73 = scmp.eq.s32.totalorder %s14, 1
    %p74 = por %p72, %p73
    %p75 = scmp.ne.s32.totalorder %s66, %s67
    %p76 = scmp.eq.s32.totalorder %s14, 0
    %p77 = por %p75, %p76
    %p78 = scmp.ne.s32.totalorder %s66, %s67
    %p79 = scmp.eq.s32.totalorder %s15, 1
    %p80 = por %p78, %p79
    %p82 = scmp.ne.s32.totalorder %s67, %s81
    %p83 = scmp.eq.s32.totalorder %s15, 0
    %p84 = por %p82, %p83
    %s85 = ssub.s32 %s9, %s16
    %p86 = scmp.eq.s32.totalorder %s85, 0
    %s88 = sadd.s32 %s87, 1
    %s89 = scalar_select %p86, %s87, %s88
    %p92 = pneg %p86
    %p93 = scmp.eq.s32.totalorder %s9, 1
    %p94 = por %p92, %p93
    %p95 = scmp.ne.s32.totalorder %s87, %s90
    %p96 = scmp.eq.s32.totalorder %s9, 0
    %p97 = por %p95, %p96
    %p98 = scmp.ne.s32.totalorder %s87, %s90
    %p99 = scmp.eq.s32.totalorder %s14, 1
    %p100 = por %p98, %p99
    %p101 = scmp.ne.s32.totalorder %s90, %s91
    %p102 = scmp.eq.s32.totalorder %s14, 0
    %p103 = por %p101, %p102
    %p104 = scmp.ne.s32.totalorder %s90, %s91
    %p105 = scmp.eq.s32.totalorder %s15, 1
    %p106 = por %p104, %p105
    %p108 = scmp.ne.s32.totalorder %s91, %s107
    %p109 = scmp.eq.s32.totalorder %s15, 0
    %p110 = por %p108, %p109
    %p111 = scmp.le.s32.totalorder 1, %s9
    %p112 = scmp.lt.s32.totalorder %s9, 3
    %p113 = pnand %p111, %p112
    %p114 = pneg %p113
    // Predicated region
    $region9: #{downsample_pallas.1} parent=5 // pred_check
      _
    $region10: #{downsample_pallas.1} parent=5 // pred_check_branch
      %116 = sbr.rel (%p113) target = $region12
    $region11: #{downsample_pallas.1} parent=5 // pred_region
      %s117 = ssub.s32 %s9, 1
      // Predicated region
      $region13: #{downsample_pallas.1} parent=11 // pred_check
        %p118 = pneg %p56
      $region14: #{downsample_pallas.1} parent=11 // pred_check_branch
        %120 = sbr.rel (%p118) target = $region16
      $region15: #{downsample_pallas.1} parent=11 // pred_region
        _
      $region16: #{downsample_pallas.1} parent=11 // pred_fallthru
        _
      // Predicated region
      $region17: #{downsample_pallas.1} parent=11 // pred_check
        %p121 = pneg %p77
      $region18: #{downsample_pallas.1} parent=11 // pred_check_branch
        %123 = sbr.rel (%p121) target = $region20
      $region19: #{downsample_pallas.1} parent=11 // pred_region
        _
      $region20: #{downsample_pallas.1} parent=11 // pred_fallthru
        _
    $region12: #{downsample_pallas.1} parent=5 // pred_fallthru
      _
    %p124 = scmp.lt.s32.totalorder %s9, 2
    // Predicated region
    $region21: #{downsample_pallas.1} parent=5 // pred_check
      %p125 = pneg %p124
    $region22: #{downsample_pallas.1} parent=5 // pred_check_branch
      %127 = sbr.rel (%p125) target = $region24
    $region23: #{downsample_pallas.1} parent=5 // pred_region
      // Predicated region
      $region25: #{downsample_pallas.1} parent=23 // pred_check
        %p128 = pneg %p29
      $region26: #{downsample_pallas.1} parent=23 // pred_check_branch
        %130 = sbr.rel (%p128) target = $region28
      $region27: #{downsample_pallas.1} parent=23 // pred_region
        %p131 = scmp.lt.s32.totalorder %s9, 1
        %s132 = scalar_select %p131, %s9, 1
        %s133 = smul.addr %s132, 8
        %s134 = smul.addr %s133, 4
        %s135 = scalar_lea.vmem %s0, %s134
      $region28: #{downsample_pallas.1} parent=23 // pred_fallthru
        _
    $region24: #{downsample_pallas.1} parent=5 // pred_fallthru
      _
    %p136 = scmp.le.s32.totalorder 1, %s9
    %p137 = scmp.lt.s32.totalorder %s9, 3
    %p138 = pnand %p136, %p137
    %p139 = pneg %p138
    // Predicated region
    $region29: #{downsample_pallas.1} parent=5 // pred_check
      _
    $region30: #{downsample_pallas.1} parent=5 // pred_check_branch
      %141 = sbr.rel (%p138) target = $region32
    $region31: #{downsample_pallas.1} parent=5 // pred_region
      %s142 = ssub.s32 %s9, 1
      %p143 = scmp.lt.s32.totalorder %s14, 1
      %s144 = scalar_select %p143, %s14, 1
      %s145 = smul.addr %s144, 8
      %s146 = smul.addr %s145, 4
      %s147 = scalar_lea.vmem %s0, %s146
      %p148 = pneg %p35
      %p149 = pneg %p32
      %p150 = pneg %p56
      %p151 = pneg %p53
      %p152 = pneg %p77
      %p153 = pneg %p74
      %p154 = pneg %p103
      %p155 = pneg %p100
      %p156 = scmp.lt.s32.totalorder %s14, 1
      %s157 = scalar_select %p156, %s14, 1
      %s158 = smul.addr %s157, 8
      %s159 = smul.addr %s158, 8
      %s160 = scalar_lea.vmem %s3, %s159
      %p161 = scmp.lt.s32.totalorder %s14, 1
      %s162 = scalar_select %p161, %s14, 1
      %s163 = smul.addr %s162, 8
      %s164 = smul.addr %s163, 4
      %s165 = scalar_lea.vmem %s0, %s164
      %p166 = scmp.lt.s32.totalorder %s14, 1
      %s167 = scalar_select %p166, %s14, 1
      %s168 = smul.addr %s167, 8
      %s169 = smul.addr %s168, 8
      %s170 = scalar_lea.vmem %s3, %s169
      %vm172 = vcmask 130048
      %173 = vst.msk [vmem:[#allocation2] sm:$0xff] %vm172, 0.0
      %vm174 = vcmask 123904
      %175 = vst.msk [vmem:[#allocation2 + $0x8] sm:$0x3] %vm174, 0.0
      %176 = vst.msk [vmem:[#allocation2 + $0x10] sm:$0xff] %vm172, 0.0
      %177 = vst.msk [vmem:[#allocation2 + $0x18] sm:$0x3] %vm174, 0.0
      %178 = vst.msk [vmem:[#allocation2 + $0x20] sm:$0xff] %vm172, 0.0
      %179 = vst.msk [vmem:[#allocation2 + $0x28] sm:$0x3] %vm174, 0.0
      %180 = vst.msk [vmem:[#allocation2 + $0x30] sm:$0xff] %vm172, 0.0
      %181 = vst.msk [vmem:[#allocation2 + $0x38] sm:$0x3] %vm174, 0.0
      %182 = vst.msk [vmem:[#allocation2 + $0x40] sm:$0xff] %vm172, 0.0
      %183 = vst.msk [vmem:[#allocation2 + $0x48] sm:$0x3] %vm174, 0.0
      %184 = vst.msk [vmem:[#allocation2 + $0x50] sm:$0xff] %vm172, 0.0
      %185 = vst.msk [vmem:[#allocation2 + $0x58] sm:$0x3] %vm174, 0.0
      %186 = vst.msk [vmem:[#allocation2 + $0x60] sm:$0xff] %vm172, 0.0
      %187 = vst.msk [vmem:[#allocation2 + $0x68] sm:$0x3] %vm174, 0.0
      %188 = vst.msk [vmem:[#allocation2 + $0x70] sm:$0xff] %vm172, 0.0
      %189 = vst.msk [vmem:[#allocation2 + $0x78] sm:$0x3] %vm174, 0.0
      %190 = vst.msk [vmem:[#allocation2 + $0x80] sm:$0xff] %vm172, 0.0
      %191 = vst.msk [vmem:[#allocation2 + $0x88] sm:$0x3] %vm174, 0.0
      %192 = vst.msk [vmem:[#allocation2 + $0x90] sm:$0xff] %vm172, 0.0
      %193 = vst.msk [vmem:[#allocation2 + $0x98] sm:$0x3] %vm174, 0.0
      %v194 = vld [vmem:[%s165] sm:$0xf]
      %v195 = vld [vmem:[%s165 + $0x4] sm:$0xf]
      %v196 = vld [vmem:[%s165 + $0x8] sm:$0xf]
      %v197 = vld [vmem:[%s165 + $0xc] sm:$0xf]
      %v198 = vld [vmem:[%s165 + $0x10] sm:$0xf]
      %v199 = vld [vmem:[%s165 + $0x14] sm:$0xf]
      %v200 = vld [vmem:[%s165 + $0x18] sm:$0xf]
      %v201 = vld [vmem:[%s165 + $0x1c] sm:$0xf]
      %v202 = vunpack.c.l.bf16 %v194
      %v203 = vunpack.c.l.bf16 %v195
      %v204 = vunpack.c.l.bf16 %v196
      %v205 = vunpack.c.l.bf16 %v197
      %v206 = vunpack.c.l.bf16 %v198
      %v207 = vunpack.c.l.bf16 %v199
      %v208 = vunpack.c.l.bf16 %v200
      %v209 = vunpack.c.l.bf16 %v201
      %s210 = scalar_lea.vmem [#allocation2], 16
      %211 = vst.msk [vmem:[%s210 + $0x1] sm:$0xff] %vm172, %v202
      %212 = vst.msk [vmem:[%s210 + $0x11] sm:$0xff] %vm172, %v203
      %213 = vst.msk [vmem:[%s210 + $0x21] sm:$0xff] %vm172, %v204
      %214 = vst.msk [vmem:[%s210 + $0x31] sm:$0xff] %vm172, %v205
      %215 = vst.msk [vmem:[%s210 + $0x41] sm:$0xff] %vm172, %v206
      %216 = vst.msk [vmem:[%s210 + $0x51] sm:$0xff] %vm172, %v207
      %217 = vst.msk [vmem:[%s210 + $0x61] sm:$0xff] %vm172, %v208
      %218 = vst.msk [vmem:[%s210 + $0x71] sm:$0xff] %vm172, %v209
      %v219 = vld [vmem:[#allocation2] sm:$0xff]
      %v220 = vld [vmem:[#allocation2 + $0x10] sm:$0xff]
      %v221 = vld [vmem:[#allocation2 + $0x20] sm:$0xff]
      %v222 = vld [vmem:[#allocation2 + $0x30] sm:$0xff]
      %v223 = vld [vmem:[#allocation2 + $0x40] sm:$0xff]
      %v224 = vld [vmem:[#allocation2 + $0x50] sm:$0xff]
      %v225 = vld [vmem:[#allocation2 + $0x60] sm:$0xff]
      %v226 = vld [vmem:[#allocation2 + $0x70] sm:$0xff]
      %v227 = vld [vmem:[#allocation2 + $0x1] sm:$0xff]
      %v228 = vld [vmem:[#allocation2 + $0x11] sm:$0xff]
      %v229 = vld [vmem:[#allocation2 + $0x21] sm:$0xff]
      %v230 = vld [vmem:[#allocation2 + $0x31] sm:$0xff]
      %v231 = vld [vmem:[#allocation2 + $0x41] sm:$0xff]
      %v232 = vld [vmem:[#allocation2 + $0x51] sm:$0xff]
      %v233 = vld [vmem:[#allocation2 + $0x61] sm:$0xff]
      %v234 = vld [vmem:[#allocation2 + $0x71] sm:$0xff]
      %v235 = vld [vmem:[#allocation2 + $0x2] sm:$0xff]
      %v236 = vld [vmem:[#allocation2 + $0x12] sm:$0xff]
      %v237 = vld [vmem:[#allocation2 + $0x22] sm:$0xff]
      %v238 = vld [vmem:[#allocation2 + $0x32] sm:$0xff]
      %v239 = vld [vmem:[#allocation2 + $0x42] sm:$0xff]
      %v240 = vld [vmem:[#allocation2 + $0x52] sm:$0xff]
      %v241 = vld [vmem:[#allocation2 + $0x62] sm:$0xff]
      %v242 = vld [vmem:[#allocation2 + $0x72] sm:$0xff]
      %v243 = vld [vmem:[%s210] sm:$0xff]
      %v244 = vld [vmem:[%s210 + $0x10] sm:$0xff]
      %v245 = vld [vmem:[%s210 + $0x20] sm:$0xff]
      %v246 = vld [vmem:[%s210 + $0x30] sm:$0xff]
      %v247 = vld [vmem:[%s210 + $0x40] sm:$0xff]
      %v248 = vld [vmem:[%s210 + $0x50] sm:$0xff]
      %v249 = vld [vmem:[%s210 + $0x60] sm:$0xff]
      %v250 = vld [vmem:[%s210 + $0x70] sm:$0xff]
      %v251 = vld [vmem:[%s210 + $0x1] sm:$0xff]
      %v252 = vld [vmem:[%s210 + $0x11] sm:$0xff]
      %v253 = vld [vmem:[%s210 + $0x21] sm:$0xff]
      %v254 = vld [vmem:[%s210 + $0x31] sm:$0xff]
      %v255 = vld [vmem:[%s210 + $0x41] sm:$0xff]
      %v256 = vld [vmem:[%s210 + $0x51] sm:$0xff]
      %v257 = vld [vmem:[%s210 + $0x61] sm:$0xff]
      %v258 = vld [vmem:[%s210 + $0x71] sm:$0xff]
      %v259 = vld [vmem:[%s210 + $0x2] sm:$0xff]
      %v260 = vld [vmem:[%s210 + $0x12] sm:$0xff]
      %v261 = vld [vmem:[%s210 + $0x22] sm:$0xff]
      %v262 = vld [vmem:[%s210 + $0x32] sm:$0xff]
      %v263 = vld [vmem:[%s210 + $0x42] sm:$0xff]
      %v264 = vld [vmem:[%s210 + $0x52] sm:$0xff]
      %v265 = vld [vmem:[%s210 + $0x62] sm:$0xff]
      %v266 = vld [vmem:[%s210 + $0x72] sm:$0xff]
      %s267 = scalar_lea.vmem [#allocation2], 32
      %v268 = vld [vmem:[%s267] sm:$0xff]
      %v269 = vld [vmem:[%s267 + $0x10] sm:$0xff]
      %v270 = vld [vmem:[%s267 + $0x20] sm:$0xff]
      %v271 = vld [vmem:[%s267 + $0x30] sm:$0xff]
      %v272 = vld [vmem:[%s267 + $0x40] sm:$0xff]
      %v273 = vld [vmem:[%s267 + $0x50] sm:$0xff]
      %v274 = vld [vmem:[%s267 + $0x60] sm:$0xff]
      %v275 = vld [vmem:[%s267 + $0x70] sm:$0xff]
      %v276 = vld [vmem:[%s267 + $0x1] sm:$0xff]
      %v277 = vld [vmem:[%s267 + $0x11] sm:$0xff]
      %v278 = vld [vmem:[%s267 + $0x21] sm:$0xff]
      %v279 = vld [vmem:[%s267 + $0x31] sm:$0xff]
      %v280 = vld [vmem:[%s267 + $0x41] sm:$0xff]
      %v281 = vld [vmem:[%s267 + $0x51] sm:$0xff]
      %v282 = vld [vmem:[%s267 + $0x61] sm:$0xff]
      %v283 = vld [vmem:[%s267 + $0x71] sm:$0xff]
      %v284 = vld [vmem:[%s267 + $0x2] sm:$0xff]
      %v285 = vld [vmem:[%s267 + $0x12] sm:$0xff]
      %v286 = vld [vmem:[%s267 + $0x22] sm:$0xff]
      %v287 = vld [vmem:[%s267 + $0x32] sm:$0xff]
      %v288 = vld [vmem:[%s267 + $0x42] sm:$0xff]
      %v289 = vld [vmem:[%s267 + $0x52] sm:$0xff]
      %v290 = vld [vmem:[%s267 + $0x62] sm:$0xff]
      %v291 = vld [vmem:[%s267 + $0x72] sm:$0xff]
      %300 = vrot.lane.b32.xlu0 %v227, 16
      %v301 = vpop.permute.xlu0 %300
      %302 = vrot.lane.b32.xlu0 %v228, 16
      %v303 = vpop.permute.xlu0 %302
      %304 = vrot.lane.b32.xlu0 %v229, 16
      %v305 = vpop.permute.xlu0 %304
      %306 = vrot.lane.b32.xlu0 %v230, 16
      %v307 = vpop.permute.xlu0 %306
      %308 = vrot.lane.b32.xlu0 %v231, 16
      %v309 = vpop.permute.xlu0 %308
      %310 = vrot.lane.b32.xlu0 %v232, 16
      %v311 = vpop.permute.xlu0 %310
      %312 = vrot.lane.b32.xlu0 %v233, 16
      %v313 = vpop.permute.xlu0 %312
      %314 = vrot.lane.b32.xlu0 %v234, 16
      %v315 = vpop.permute.xlu0 %314
      %332 = vrot.lane.b32.xlu0 %v235, 32
      %v333 = vpop.permute.xlu0 %332
      %334 = vrot.lane.b32.xlu0 %v236, 32
      %v335 = vpop.permute.xlu0 %334
      %336 = vrot.lane.b32.xlu0 %v237, 32
      %v337 = vpop.permute.xlu0 %336
      %338 = vrot.lane.b32.xlu0 %v238, 32
      %v339 = vpop.permute.xlu0 %338
      %340 = vrot.lane.b32.xlu0 %v239, 32
      %v341 = vpop.permute.xlu0 %340
      %342 = vrot.lane.b32.xlu0 %v240, 32
      %v343 = vpop.permute.xlu0 %342
      %344 = vrot.lane.b32.xlu0 %v241, 32
      %v345 = vpop.permute.xlu0 %344
      %346 = vrot.lane.b32.xlu0 %v242, 32
      %v347 = vpop.permute.xlu0 %346
      %364 = vrot.lane.b32.xlu0 %v243, 48
      %v365 = vpop.permute.xlu0 %364
      %366 = vrot.lane.b32.xlu0 %v244, 48
      %v367 = vpop.permute.xlu0 %366
      %368 = vrot.lane.b32.xlu0 %v245, 48
      %v369 = vpop.permute.xlu0 %368
      %370 = vrot.lane.b32.xlu0 %v246, 48
      %v371 = vpop.permute.xlu0 %370
      %372 = vrot.lane.b32.xlu0 %v247, 48
      %v373 = vpop.permute.xlu0 %372
      %374 = vrot.lane.b32.xlu0 %v248, 48
      %v375 = vpop.permute.xlu0 %374
      %376 = vrot.lane.b32.xlu0 %v249, 48
      %v377 = vpop.permute.xlu0 %376
      %378 = vrot.lane.b32.xlu0 %v250, 48
      %v379 = vpop.permute.xlu0 %378
      %396 = vrot.lane.b32.xlu0 %v251, 64
      %v397 = vpop.permute.xlu0 %396
      %398 = vrot.lane.b32.xlu0 %v252, 64
      %v399 = vpop.permute.xlu0 %398
      %400 = vrot.lane.b32.xlu0 %v253, 64
      %v401 = vpop.permute.xlu0 %400
      %402 = vrot.lane.b32.xlu0 %v254, 64
      %v403 = vpop.permute.xlu0 %402
      %404 = vrot.lane.b32.xlu0 %v255, 64
      %v405 = vpop.permute.xlu0 %404
      %406 = vrot.lane.b32.xlu0 %v256, 64
      %v407 = vpop.permute.xlu0 %406
      %408 = vrot.lane.b32.xlu0 %v257, 64
      %v409 = vpop.permute.xlu0 %408
      %410 = vrot.lane.b32.xlu0 %v258, 64
      %v411 = vpop.permute.xlu0 %410
      %428 = vrot.lane.b32.xlu0 %v259, 80
      %v429 = vpop.permute.xlu0 %428
      %430 = vrot.lane.b32.xlu0 %v260, 80
      %v431 = vpop.permute.xlu0 %430
      %432 = vrot.lane.b32.xlu0 %v261, 80
      %v433 = vpop.permute.xlu0 %432
      %434 = vrot.lane.b32.xlu0 %v262, 80
      %v435 = vpop.permute.xlu0 %434
      %436 = vrot.lane.b32.xlu0 %v263, 80
      %v437 = vpop.permute.xlu0 %436
      %438 = vrot.lane.b32.xlu0 %v264, 80
      %v439 = vpop.permute.xlu0 %438
      %440 = vrot.lane.b32.xlu0 %v265, 80
      %v441 = vpop.permute.xlu0 %440
      %442 = vrot.lane.b32.xlu0 %v266, 80
      %v443 = vpop.permute.xlu0 %442
      %460 = vrot.lane.b32.xlu0 %v268, 96
      %v461 = vpop.permute.xlu0 %460
      %462 = vrot.lane.b32.xlu0 %v269, 96
      %v463 = vpop.permute.xlu0 %462
      %464 = vrot.lane.b32.xlu0 %v270, 96
      %v465 = vpop.permute.xlu0 %464
      %466 = vrot.lane.b32.xlu0 %v271, 96
      %v467 = vpop.permute.xlu0 %466
      %468 = vrot.lane.b32.xlu0 %v272, 96
      %v469 = vpop.permute.xlu0 %468
      %470 = vrot.lane.b32.xlu0 %v273, 96
      %v471 = vpop.permute.xlu0 %470
      %472 = vrot.lane.b32.xlu0 %v274, 96
      %v473 = vpop.permute.xlu0 %472
      %474 = vrot.lane.b32.xlu0 %v275, 96
      %v475 = vpop.permute.xlu0 %474
      %492 = vrot.lane.b32.xlu0 %v276, 112
      %v493 = vpop.permute.xlu0 %492
      %494 = vrot.lane.b32.xlu0 %v277, 112
      %v495 = vpop.permute.xlu0 %494
      %496 = vrot.lane.b32.xlu0 %v278, 112
      %v497 = vpop.permute.xlu0 %496
      %498 = vrot.lane.b32.xlu0 %v279, 112
      %v499 = vpop.permute.xlu0 %498
      %500 = vrot.lane.b32.xlu0 %v280, 112
      %v501 = vpop.permute.xlu0 %500
      %502 = vrot.lane.b32.xlu0 %v281, 112
      %v503 = vpop.permute.xlu0 %502
      %504 = vrot.lane.b32.xlu0 %v282, 112
      %v505 = vpop.permute.xlu0 %504
      %506 = vrot.lane.b32.xlu0 %v283, 112
      %v507 = vpop.permute.xlu0 %506
      %v516 = vsel %vm172, %v219, %v301
      %v517 = vsel %vm172, %v220, %v303
      %v518 = vsel %vm172, %v221, %v305
      %v519 = vsel %vm172, %v222, %v307
      %v520 = vsel %vm172, %v223, %v309
      %v521 = vsel %vm172, %v224, %v311
      %v522 = vsel %vm172, %v225, %v313
      %v523 = vsel %vm172, %v226, %v315
      %vm524 = vcmask 261120
      %v525 = vsel %vm524, %v516, %v333
      %v526 = vsel %vm524, %v517, %v335
      %v527 = vsel %vm524, %v518, %v337
      %v528 = vsel %vm524, %v519, %v339
      %v529 = vsel %vm524, %v520, %v341
      %v530 = vsel %vm524, %v521, %v343
      %v531 = vsel %vm524, %v522, %v345
      %v532 = vsel %vm524, %v523, %v347
      %vm533 = vcmask 392192
      %v534 = vsel %vm533, %v525, %v365
      %v535 = vsel %vm533, %v526, %v367
      %v536 = vsel %vm533, %v527, %v369
      %v537 = vsel %vm533, %v528, %v371
      %v538 = vsel %vm533, %v529, %v373
      %v539 = vsel %vm533, %v530, %v375
      %v540 = vsel %vm533, %v531, %v377
      %v541 = vsel %vm533, %v532, %v379
      %vm542 = vcmask 523264
      %v543 = vsel %vm542, %v534, %v397
      %v544 = vsel %vm542, %v535, %v399
      %v545 = vsel %vm542, %v536, %v401
      %v546 = vsel %vm542, %v537, %v403
      %v547 = vsel %vm542, %v538, %v405
      %v548 = vsel %vm542, %v539, %v407
      %v549 = vsel %vm542, %v540, %v409
      %v550 = vsel %vm542, %v541, %v411
      %vm551 = vcmask 654336
      %v552 = vsel %vm551, %v543, %v429
      %v553 = vsel %vm551, %v544, %v431
      %v554 = vsel %vm551, %v545, %v433
      %v555 = vsel %vm551, %v546, %v435
      %v556 = vsel %vm551, %v547, %v437
      %v557 = vsel %vm551, %v548, %v439
      %v558 = vsel %vm551, %v549, %v441
      %v559 = vsel %vm551, %v550, %v443
      %vm560 = vcmask 785408
      %v561 = vsel %vm560, %v552, %v461
      %v562 = vsel %vm560, %v553, %v463
      %v563 = vsel %vm560, %v554, %v465
      %v564 = vsel %vm560, %v555, %v467
      %v565 = vsel %vm560, %v556, %v469
      %v566 = vsel %vm560, %v557, %v471
      %v567 = vsel %vm560, %v558, %v473
      %v568 = vsel %vm560, %v559, %v475
      %vm569 = vcmask 916480
      %v570 = vsel %vm569, %v561, %v493
      %v571 = vsel %vm569, %v562, %v495
      %v572 = vsel %vm569, %v563, %v497
      %v573 = vsel %vm569, %v564, %v499
      %v574 = vsel %vm569, %v565, %v501
      %v575 = vsel %vm569, %v566, %v503
      %v576 = vsel %vm569, %v567, %v505
      %v577 = vsel %vm569, %v568, %v507
      %v578 = vpack.c.bf16 %v571, %v570
      %v579 = vpack.c.bf16 %v285, %v284
      %v580 = vpack.c.bf16 %v573, %v572
      %v581 = vpack.c.bf16 %v287, %v286
      %v582 = vpack.c.bf16 %v575, %v574
      %v583 = vpack.c.bf16 %v289, %v288
      %v584 = vpack.c.bf16 %v577, %v576
      %v585 = vpack.c.bf16 %v291, %v290
      %v586 = vld [vmem:[%s1] sm:$0xf]
      %v587 = vld [vmem:[%s1 + $0x4] sm:$0xf]
      %v588 = vld [vmem:[%s1 + $0x8] sm:$0xf]
      %v589 = vld [vmem:[%s1 + $0xc] sm:$0xf]
      %v590 = vld [vmem:[%s1 + $0x10] sm:$0xf]
      %v591 = vld [vmem:[%s1 + $0x14] sm:$0xf]
      %v592 = vld [vmem:[%s1 + $0x18] sm:$0xf]
      %v593 = vld [vmem:[%s1 + $0x1c] sm:$0xf]
      %v594 = vld [vmem:[%s1 + $0x20] sm:$0xf]
      %v595 = vld [vmem:[%s1 + $0x24] sm:$0xf]
      %v596 = vld [vmem:[%s1 + $0x28] sm:$0xf]
      %v597 = vld [vmem:[%s1 + $0x2c] sm:$0xf]
      %v598 = vld [vmem:[%s1 + $0x30] sm:$0xf]
      %v599 = vld [vmem:[%s1 + $0x34] sm:$0xf]
      %v600 = vld [vmem:[%s1 + $0x38] sm:$0xf]
      %v601 = vld [vmem:[%s1 + $0x3c] sm:$0xf]
      %v602 = vld [vmem:[%s1 + $0x40] sm:$0xf]
      %v603 = vld [vmem:[%s1 + $0x44] sm:$0xf]
      %v604 = vld [vmem:[%s2] sm:$0x1]
      %v606 = vperm.slane %v604, 0
      %v626 = vunpack.c.l.b16 %v586
      %v627 = vunpack.c.l.b16 %v587
      %v628 = vunpack.c.l.b16 %v588
      %v629 = vunpack.c.l.b16 %v589
      %v630 = vunpack.c.l.b16 %v590
      %v631 = vunpack.c.l.b16 %v591
      %v632 = vunpack.c.l.b16 %v592
      %v633 = vunpack.c.l.b16 %v593
      %v634 = vunpack.c.l.b16 %v594
      %v635 = vunpack.c.l.b16 %v595
      %v636 = vunpack.c.l.b16 %v596
      %v637 = vunpack.c.l.b16 %v597
      %v638 = vunpack.c.l.b16 %v598
      %v639 = vunpack.c.l.b16 %v599
      %v640 = vunpack.c.l.b16 %v600
      %v641 = vunpack.c.l.b16 %v601
      %v642 = vunpack.c.l.b16 %v602
      %v643 = vunpack.c.l.b16 %v603
      %v644 = vpack.c.b16 %v627, %v626
      %v645 = vpack.c.b16 %v629, %v628
      %v646 = vpack.c.b16 %v631, %v630
      %v647 = vpack.c.b16 %v633, %v632
      %v648 = vpack.c.b16 %v635, %v634
      %v649 = vpack.c.b16 %v637, %v636
      %v650 = vpack.c.b16 %v639, %v638
      %v651 = vpack.c.b16 %v641, %v640
      %v652 = vpack.c.b16 %v643, %v642
      %v663 = vsel %vm172, %v579, 0
      %v666 = vsel %vm172, %v581, 0
      %v669 = vsel %vm172, %v583, 0
      %v672 = vsel %vm172, %v585, 0
      %674 = vmatpush.bf16.msra.mxu0 %v651
      %675 = vmatpush.bf16.msra.mxu0 %v650
      %676 = vmatpush.bf16.msra.mxu0 %v649
      %677 = vmatpush.bf16.msra.mxu0 %v648
      %678 = vmatpush.bf16.msra.mxu0 %v647
      %679 = vmatpush.bf16.msra.mxu0 %v646
      %680 = vmatpush.bf16.msra.mxu0 %v645
      %681 = vmatpush.bf16.msra.mxu0 %v644
      %682 = vmatmul.bf16.gmra.mxu0 %v578
      %v683 = vpop.f32.mrf.mxu0
      %v684 = vadd.f32 %v606, %v683
      %v685 = vpop.f32.mrf.mxu0
      %v686 = vadd.f32 %v606, %v685
      %687 = vmatmul.bf16.gmra.mxu0 %v580
      %v688 = vpop.f32.mrf.mxu0
      %v689 = vadd.f32 %v606, %v688
      %v690 = vpop.f32.mrf.mxu0
      %v691 = vadd.f32 %v606, %v690
      %692 = vmatmul.bf16.gmra.mxu0 %v582
      %v693 = vpop.f32.mrf.mxu0
      %v694 = vadd.f32 %v606, %v693
      %v695 = vpop.f32.mrf.mxu0
      %v696 = vadd.f32 %v606, %v695
      %697 = vmatmul.bf16.gmra.mxu0 %v584
      %v698 = vpop.f32.mrf.mxu0
      %v699 = vadd.f32 %v606, %v698
      %v700 = vpop.f32.mrf.mxu0
      %v701 = vadd.f32 %v606, %v700
      %702 = vdwg.mxu0
      %703 = vmatpush.bf16.msra.mxu0 0
      %704 = vmatpush.bf16.msra.mxu0 0
      %705 = vmatpush.bf16.msra.mxu0 0
      %706 = vmatpush.bf16.msra.mxu0 0
      %707 = vmatpush.bf16.msra.mxu0 0
      %708 = vmatpush.bf16.msra.mxu0 0
      %709 = vmatpush.bf16.msra.mxu0 0
      %710 = vmatpush.bf16.msra.mxu0 %v652
      %711 = vmatmul.bf16.gmra.mxu0 %v663
      %v712 = vpop.f32.mrf.mxu0
      %v713 = vadd.f32 %v684, %v712
      %v714 = vpop.f32.mrf.mxu0
      %v715 = vadd.f32 %v686, %v714
      %716 = vmatmul.bf16.gmra.mxu0 %v666
      %v717 = vpop.f32.mrf.mxu0
      %v718 = vadd.f32 %v689, %v717
      %v719 = vpop.f32.mrf.mxu0
      %v720 = vadd.f32 %v691, %v719
      %721 = vmatmul.bf16.gmra.mxu0 %v669
      %v722 = vpop.f32.mrf.mxu0
      %v723 = vadd.f32 %v694, %v722
      %v724 = vpop.f32.mrf.mxu0
      %v725 = vadd.f32 %v696, %v724
      %726 = vmatmul.bf16.gmra.mxu0 %v672
      %v727 = vpop.f32.mrf.mxu0
      %v728 = vadd.f32 %v699, %v727
      %v729 = vpop.f32.mrf.mxu0
      %v730 = vadd.f32 %v701, %v729
      %731 = vdwg.mxu0
      %732 = vst [vmem:[%s170] sm:$0xff] %v713
      %733 = vst [vmem:[%s170 + $0x8] sm:$0xff] %v715
      %734 = vst [vmem:[%s170 + $0x10] sm:$0xff] %v718
      %735 = vst [vmem:[%s170 + $0x18] sm:$0xff] %v720
      %736 = vst [vmem:[%s170 + $0x20] sm:$0xff] %v723
      %737 = vst [vmem:[%s170 + $0x28] sm:$0xff] %v725
      %738 = vst [vmem:[%s170 + $0x30] sm:$0xff] %v728
      %739 = vst [vmem:[%s170 + $0x38] sm:$0xff] %v730
      %p740 = scmp.lt.s32.totalorder %s14, 1
      %s741 = scalar_select %p740, %s14, 1
      %s742 = smul.addr %s741, 8
      %s743 = smul.addr %s742, 8
      %s744 = scalar_lea.vmem %s3, %s743
      // Predicated region
      $region33: #{downsample_pallas.1} parent=31 // pred_check
        %p745 = pneg %p100
      $region34: #{downsample_pallas.1} parent=31 // pred_check_branch
        %747 = sbr.rel (%p745) target = $region36
      $region35: #{downsample_pallas.1} parent=31 // pred_region
        _
      $region36: #{downsample_pallas.1} parent=31 // pred_fallthru
        _
    $region32: #{downsample_pallas.1} parent=5 // pred_fallthru
      _
    %p748 = scmp.le.s32.totalorder 2, %s9
    // Predicated region
    $region37: #{downsample_pallas.1} parent=5 // pred_check
      %p749 = pneg %p748
    $region38: #{downsample_pallas.1} parent=5 // pred_check_branch
      %751 = sbr.rel (%p749) target = $region40
    $region39: #{downsample_pallas.1} parent=5 // pred_region
      %s752 = ssub.s32 %s9, 2
      // Predicated region
      $region41: #{downsample_pallas.1} parent=39 // pred_check
        %p753 = pneg %p106
      $region42: #{downsample_pallas.1} parent=39 // pred_check_branch
        %755 = sbr.rel (%p753) target = $region44
      $region43: #{downsample_pallas.1} parent=39 // pred_region
        %p756 = scmp.lt.s32.totalorder %s15, 1
        %s757 = scalar_select %p756, %s15, 1
        %s758 = smul.addr %s757, 8
        %s759 = smul.addr %s758, 8
        %s760 = scalar_lea.vmem %s3, %s759
      $region44: #{downsample_pallas.1} parent=39 // pred_fallthru
        _
    $region40: #{downsample_pallas.1} parent=5 // pred_fallthru
      _
  $region6: #{downsample_pallas.1} parent=0 // loop_footer
    %s13 = sadd.s32 1, %s9
  $region7: #{downsample_pallas.1} parent=0 // loop_footer_branch
    %8 = sbr.rel target = $region3
  $region8: #{downsample_pallas.1} parent=0 // loop_exit
    _

</llo_original>
